<compile_context>
chip_gen: v6e
topology: v6e:2x2x1
jax: 0.10.0
libtpu: 0.0.40
codegen_flags: <defaults>
</compile_context>

<pallas_src>
import functools

import jax
import jax.numpy as jnp
from jax.experimental import pallas as pl
from jax.experimental.pallas import tpu as pltpu


def channel_attention_kernel(x_ref, w1t_ref, b1_ref, w2t_ref, b2_ref, o_ref,
                             sum_acc, max_acc, *, inv_hw):
    # x_ref:   (b_tile, C, hw_tile)   activation tile (input dtype)
    # w1t_ref: (C, MID)   first linear weight, pre-transposed (resident)
    # b1_ref:  (1, MID)
    # w2t_ref: (MID, C)   second linear weight, pre-transposed (resident)
    # b2_ref:  (1, C)
    # o_ref:   (b_tile, C)            sigmoid attention (written at finalize only)
    # sum_acc/max_acc: (b_tile, C) f32 VMEM scratch accumulators
    k = pl.program_id(1)

    @pl.when(k == 0)
    def _init():
        sum_acc[...] = jnp.zeros_like(sum_acc)
        max_acc[...] = jnp.full_like(max_acc, -jnp.inf)

    x = x_ref[...]  # keep bulk data in its own dtype (bf16 stays bf16 for the max)
    sum_acc[...] += jnp.sum(x.astype(jnp.float32), axis=-1)            # f32 accumulation
    max_acc[...] = jnp.maximum(max_acc[...],
                               jnp.max(x, axis=-1).astype(jnp.float32))

    @pl.when(k == pl.num_programs(1) - 1)
    def _finalize():
        avg_pool = sum_acc[...] * inv_hw          # (b_tile, C)  true mean over all HW
        max_pool = max_acc[...]                   # (b_tile, C)

        w1t = w1t_ref[...]
        b1 = b1_ref[...]
        w2t = w2t_ref[...]
        b2 = b2_ref[...]

        h_avg = jnp.maximum(
            jnp.dot(avg_pool, w1t, preferred_element_type=jnp.float32) + b1, 0.0)
        h_max = jnp.maximum(
            jnp.dot(max_pool, w1t, preferred_element_type=jnp.float32) + b1, 0.0)
        # Single second matmul on the sum of hidden activations; b2 applied twice
        # (once per bottleneck branch in the reference).
        pool_sum = jnp.dot(h_avg + h_max, w2t,
                           preferred_element_type=jnp.float32) + 2.0 * b2
        o_ref[...] = jax.nn.sigmoid(pool_sum).astype(o_ref.dtype)


def _pick_b_tile(b, c, itemsize, budget_bytes=2 * 1024 * 1024):
    """Divisor of B that keeps a (b_tile, C, 128) double-buffered tile in budget.

    Must be == B or a multiple of 8 so the (b_tile, C) output block is layout-legal.
    """
    max_rows = max(1, budget_bytes // (2 * c * 128 * itemsize))
    if b <= max_rows:
        return b
    best = None
    d = 8
    while d <= max_rows and d < b:
        if b % d == 0:
            best = d
        d += 8
    return best if best is not None else b


def _pick_hw_tile(hw, row_bytes, budget_bytes=2 * 1024 * 1024):
    """Largest multiple-of-128 exact divisor of HW whose double-buffered input tile
    fits the budget; fall back to the full extent (always layout-legal)."""
    candidates = [t for t in range(128, hw + 1, 128) if hw % t == 0]
    if not candidates:
        return hw
    fitting = [t for t in candidates if 2 * row_bytes * t <= budget_bytes]
    return max(fitting) if fitting else min(candidates)


def channel_attention(x, w1, b1, w2, b2, *, b_tile=None, hw_tile=None):
    """x: (B, C, H, W) NCHW.  w1: (MID, C), b1: (MID,), w2: (C, MID), b2: (C,)."""
    B, C, H, W = x.shape
    MID = w1.shape[0]
    HW = H * W
    itemsize = jnp.dtype(x.dtype).itemsize

    x3 = x.reshape(B, C, HW)

    if b_tile is None:
        b_tile = _pick_b_tile(B, C, itemsize)
    if hw_tile is None:
        hw_tile = _pick_hw_tile(HW, row_bytes=b_tile * C * itemsize)
    assert B % b_tile == 0 and HW % hw_tile == 0

    w1t = jnp.asarray(w1, jnp.float32).T            # (C, MID)
    b1r = jnp.asarray(b1, jnp.float32).reshape(1, MID)
    w2t = jnp.asarray(w2, jnp.float32).T            # (MID, C)
    b2r = jnp.asarray(b2, jnp.float32).reshape(1, C)

    kernel = functools.partial(channel_attention_kernel, inv_hw=1.0 / float(HW))

    att = pl.pallas_call(
        kernel,
        out_shape=jax.ShapeDtypeStruct((B, C), x.dtype),
        grid_spec=pltpu.PrefetchScalarGridSpec(
            num_scalar_prefetch=0,
            grid=(B // b_tile, HW // hw_tile),          # reduction (HW) axis last
            in_specs=[
                pl.BlockSpec((b_tile, C, hw_tile), lambda b, k: (b, 0, k)),
                # Weights/biases: constant block index -> DMA'd once, kept resident.
                pl.BlockSpec((C, MID), lambda b, k: (0, 0)),
                pl.BlockSpec((1, MID), lambda b, k: (0, 0)),
                pl.BlockSpec((MID, C), lambda b, k: (0, 0)),
                pl.BlockSpec((1, C), lambda b, k: (0, 0)),
            ],
            out_specs=pl.BlockSpec((b_tile, C), lambda b, k: (b, 0)),
            scratch_shapes=[
                pltpu.VMEM((b_tile, C), jnp.float32),   # avg-sum accumulator
                pltpu.VMEM((b_tile, C), jnp.float32),   # running-max accumulator
            ],
        ),
        compiler_params=pltpu.CompilerParams(
            dimension_semantics=("parallel", "arbitrary"),
            vmem_limit_bytes=32 * 1024 * 1024,          # fits all of v5e/v6e/v7x
        ),
    )(x3, w1t, b1r, w2t, b2r)

    # Module semantics: repeat the per-(b, c) attention over all spatial positions.
    # Done outside the kernel so XLA can broadcast-fuse it with any consumer instead
    # of the kernel writing HW redundant copies to HBM.
    return jnp.broadcast_to(att[:, :, None, None], (B, C, H, W)).astype(x.dtype)


def channel_attention_ref(x, w1, b1, w2, b2):
    """Pure-JAX reference matching the PyTorch forward exactly."""
    B, C, H, W = x.shape
    xf = x.astype(jnp.float32)
    avg_pool = jnp.mean(xf, axis=(2, 3))   # (B, C)
    max_pool = jnp.max(xf, axis=(2, 3))    # (B, C)

    def bottleneck(p):
        h = p @ w1.T + b1
        h = jnp.maximum(h, 0.0)
        return h @ w2.T + b2

    sig = jax.nn.sigmoid(bottleneck(avg_pool) + bottleneck(max_pool))
    return jnp.broadcast_to(sig[:, :, None, None], (B, C, H, W)).astype(x.dtype)


if __name__ == "__main__":
    # Module config: n_channels_in=4, reduction_ratio=2 -> middle_layer_size=2
    B, C, H, W = 2, 4, 16, 16
    REDUCTION = 2
    MID = int(C / float(REDUCTION))

    key = jax.random.PRNGKey(0)
    kx, kw1, kb1, kw2, kb2 = jax.random.split(key, 5)

    x = jax.random.normal(kx, (B, C, H, W), dtype=jnp.float32)

    # Deterministic parameter init (PyTorch nn.Linear style: U(-1/sqrt(fan_in), 1/sqrt(fan_in)))
    bound1 = 1.0 / jnp.sqrt(C)
    w1 = jax.random.uniform(kw1, (MID, C), jnp.float32, -bound1, bound1)
    b1 = jax.random.uniform(kb1, (MID,), jnp.float32, -bound1, bound1)
    bound2 = 1.0 / jnp.sqrt(MID)
    w2 = jax.random.uniform(kw2, (C, MID), jnp.float32, -bound2, bound2)
    b2 = jax.random.uniform(kb2, (C,), jnp.float32, -bound2, bound2)

    # hw_tile=128 with HW=256 exercises the multi-step (init/accumulate/finalize)
    # reduction path of the grid.
    out = channel_attention(x, w1, b1, w2, b2, hw_tile=128)
    out = jax.block_until_ready(out)

    ref = channel_attention_ref(x, w1, b1, w2, b2)
    assert out.shape == (B, C, H, W)
    assert jnp.allclose(out, ref, atol=1e-5, rtol=1e-5), "mismatch vs reference"

    print("KERNEL_OK")
</pallas_src>

<mosaic_0001>
module attributes {stable_mosaic.version = 11 : i64} {
  func.func @channel_attention_kernel(%arg0: i32, %arg1: i32, %arg2: memref<2x4x128xf32, #tpu.memory_space<vmem>>, %arg3: memref<4x2xf32, #tpu.memory_space<vmem>>, %arg4: memref<1x2xf32, #tpu.memory_space<vmem>>, %arg5: memref<2x4xf32, #tpu.memory_space<vmem>>, %arg6: memref<1x4xf32, #tpu.memory_space<vmem>>, %arg7: memref<2x4xf32, #tpu.memory_space<vmem>>, %arg8: memref<2x4xf32, #tpu.memory_space<vmem>>, %arg9: memref<2x4xf32, #tpu.memory_space<vmem>>) attributes {dimension_semantics = [#tpu.dimension_semantics<parallel>, #tpu.dimension_semantics<arbitrary>], iteration_bounds = array<i64: 1, 2>, scalar_prefetch = 0 : i64, scratch_operands = 2 : i64, tpu.core_type = #tpu.core_type<tc>, window_params = [{transform_indices = @transform_0, window_bounds = array<i64: 2, 4, 128>}, {pipeline_mode = #tpu.pipeline_mode<synchronous>, transform_indices = @transform_1, window_bounds = array<i64: 4, 2>}, {pipeline_mode = #tpu.pipeline_mode<synchronous>, transform_indices = @transform_2, window_bounds = array<i64: 1, 2>}, {pipeline_mode = #tpu.pipeline_mode<synchronous>, transform_indices = @transform_3, window_bounds = array<i64: 2, 4>}, {pipeline_mode = #tpu.pipeline_mode<synchronous>, transform_indices = @transform_4, window_bounds = array<i64: 1, 4>}, {transform_indices = @transform_5, window_bounds = array<i64: 2, 4>}]} {
    %c0_i32 = arith.constant 0 : i32
    %0 = arith.cmpi eq, %arg1, %c0_i32 : i32
    %1 = arith.extui %0 : i1 to i32
    %c0_i32_0 = arith.constant 0 : i32
    %2 = arith.cmpi ne, %1, %c0_i32_0 : i32
    scf.if %2 {
      %cst_13 = arith.constant 0.000000e+00 : f32
      %15 = vector.broadcast %cst_13 : f32 to vector<2x4xf32>
      %c0_14 = arith.constant 0 : index
      %c0_15 = arith.constant 0 : index
      %16 = vector.load %arg8[%c0_14, %c0_15] : memref<2x4xf32, #tpu.memory_space<vmem>>, vector<2x4xf32>
      tpu.vector_store %arg8[%c0_14, %c0_15], %15 {strides = array<i32>} : memref<2x4xf32, #tpu.memory_space<vmem>>, vector<2x4xf32>,
      %cst_16 = arith.constant 0xFF800000 : f32
      %17 = vector.broadcast %cst_16 : f32 to vector<2x4xf32>
      %c0_17 = arith.constant 0 : index
      %c0_18 = arith.constant 0 : index
      %18 = vector.load %arg9[%c0_17, %c0_18] : memref<2x4xf32, #tpu.memory_space<vmem>>, vector<2x4xf32>
      tpu.vector_store %arg9[%c0_17, %c0_18], %17 {strides = array<i32>} : memref<2x4xf32, #tpu.memory_space<vmem>>, vector<2x4xf32>,
    } else {
    }
    %c0 = arith.constant 0 : index
    %c0_1 = arith.constant 0 : index
    %c0_2 = arith.constant 0 : index
    %3 = vector.load %arg2[%c0, %c0_1, %c0_2] : memref<2x4x128xf32, #tpu.memory_space<vmem>>, vector<2x4x128xf32>
    %c0_3 = arith.constant 0 : index
    %c0_4 = arith.constant 0 : index
    %4 = vector.load %arg8[%c0_3, %c0_4] : memref<2x4xf32, #tpu.memory_space<vmem>>, vector<2x4xf32>
    %cst = arith.constant dense<0.000000e+00> : vector<2x4xf32>
    %5 = vector.multi_reduction <add>, %3, %cst [2] : vector<2x4x128xf32> to vector<2x4xf32>
    %6 = arith.addf %4, %5 : vector<2x4xf32>
    %c0_5 = arith.constant 0 : index
    %c0_6 = arith.constant 0 : index
    %7 = vector.load %arg8[%c0_5, %c0_6] : memref<2x4xf32, #tpu.memory_space<vmem>>, vector<2x4xf32>
    tpu.vector_store %arg8[%c0_5, %c0_6], %6 {strides = array<i32>} : memref<2x4xf32, #tpu.memory_space<vmem>>, vector<2x4xf32>,
    %c0_7 = arith.constant 0 : index
    %c0_8 = arith.constant 0 : index
    %8 = vector.load %arg9[%c0_7, %c0_8] : memref<2x4xf32, #tpu.memory_space<vmem>>, vector<2x4xf32>
    %cst_9 = arith.constant dense<0xFF800000> : vector<2x4xf32>
    %9 = vector.multi_reduction <maximumf>, %3, %cst_9 [2] : vector<2x4x128xf32> to vector<2x4xf32>
    %10 = arith.maximumf %8, %9 : vector<2x4xf32>
    %c0_10 = arith.constant 0 : index
    %c0_11 = arith.constant 0 : index
    %11 = vector.load %arg9[%c0_10, %c0_11] : memref<2x4xf32, #tpu.memory_space<vmem>>, vector<2x4xf32>
    tpu.vector_store %arg9[%c0_10, %c0_11], %10 {strides = array<i32>} : memref<2x4xf32, #tpu.memory_space<vmem>>, vector<2x4xf32>,
    %c1_i32 = arith.constant 1 : i32
    %12 = arith.cmpi eq, %arg1, %c1_i32 : i32
    %13 = arith.extui %12 : i1 to i32
    %c0_i32_12 = arith.constant 0 : i32
    %14 = arith.cmpi ne, %13, %c0_i32_12 : i32
    scf.if %14 {
      %c0_13 = arith.constant 0 : index
      %c0_14 = arith.constant 0 : index
      %15 = vector.load %arg8[%c0_13, %c0_14] : memref<2x4xf32, #tpu.memory_space<vmem>>, vector<2x4xf32>
      %cst_15 = arith.constant 3.906250e-03 : f32
      %16 = vector.broadcast %cst_15 : f32 to vector<2x4xf32>
      %17 = arith.mulf %15, %16 : vector<2x4xf32>
      %c0_16 = arith.constant 0 : index
      %c0_17 = arith.constant 0 : index
      %18 = vector.load %arg9[%c0_16, %c0_17] : memref<2x4xf32, #tpu.memory_space<vmem>>, vector<2x4xf32>
      %c0_18 = arith.constant 0 : index
      %c0_19 = arith.constant 0 : index
      %19 = vector.load %arg3[%c0_18, %c0_19] : memref<4x2xf32, #tpu.memory_space<vmem>>, vector<4x2xf32>
      %c0_20 = arith.constant 0 : index
      %c0_21 = arith.constant 0 : index
      %20 = vector.load %arg4[%c0_20, %c0_21] : memref<1x2xf32, #tpu.memory_space<vmem>>, vector<1x2xf32>
      %c0_22 = arith.constant 0 : index
      %c0_23 = arith.constant 0 : index
      %21 = vector.load %arg5[%c0_22, %c0_23] : memref<2x4xf32, #tpu.memory_space<vmem>>, vector<2x4xf32>
      %c0_24 = arith.constant 0 : index
      %c0_25 = arith.constant 0 : index
      %22 = vector.load %arg6[%c0_24, %c0_25] : memref<1x4xf32, #tpu.memory_space<vmem>>, vector<1x4xf32>
      %cst_26 = arith.constant dense<0.000000e+00> : vector<2x2xf32>
      %23 = tpu.matmul %17, %19, %cst_26 {dimension_numbers = #tpu.dot_dimension_numbers<[1], [0], [0], [1], [0, 0, 1, 1], [], []>} : vector<2x4xf32>, vector<4x2xf32>, vector<2x2xf32> -> vector<2x2xf32>
      %24 = vector.broadcast %20 : vector<1x2xf32> to vector<2x2xf32>
      %25 = arith.addf %23, %24 : vector<2x2xf32>
      %cst_27 = arith.constant 0.000000e+00 : f32
      %26 = vector.broadcast %cst_27 : f32 to vector<2x2xf32>
      %27 = arith.maximumf %25, %26 : vector<2x2xf32>
      %cst_28 = arith.constant dense<0.000000e+00> : vector<2x2xf32>
      %28 = tpu.matmul %18, %19, %cst_28 {dimension_numbers = #tpu.dot_dimension_numbers<[1], [0], [0], [1], [0, 0, 1, 1], [], []>} : vector<2x4xf32>, vector<4x2xf32>, vector<2x2xf32> -> vector<2x2xf32>
      %29 = vector.broadcast %20 : vector<1x2xf32> to vector<2x2xf32>
      %30 = arith.addf %28, %29 : vector<2x2xf32>
      %cst_29 = arith.constant 0.000000e+00 : f32
      %31 = vector.broadcast %cst_29 : f32 to vector<2x2xf32>
      %32 = arith.maximumf %30, %31 : vector<2x2xf32>
      %33 = arith.addf %27, %32 : vector<2x2xf32>
      %cst_30 = arith.constant dense<0.000000e+00> : vector<2x4xf32>
      %34 = tpu.matmul %33, %21, %cst_30 {dimension_numbers = #tpu.dot_dimension_numbers<[1], [0], [0], [1], [0, 0, 1, 1], [], []>} : vector<2x2xf32>, vector<2x4xf32>, vector<2x4xf32> -> vector<2x4xf32>
      %cst_31 = arith.constant 2.000000e+00 : f32
      %35 = vector.broadcast %cst_31 : f32 to vector<1x4xf32>
      %36 = arith.mulf %35, %22 : vector<1x4xf32>
      %37 = vector.broadcast %36 : vector<1x4xf32> to vector<2x4xf32>
      %38 = arith.addf %34, %37 : vector<2x4xf32>
      %39 = arith.negf %38 : vector<2x4xf32>
      %40 = math.exp %39 : vector<2x4xf32>
      %cst_32 = arith.constant 1.000000e+00 : f32
      %41 = vector.broadcast %cst_32 : f32 to vector<2x4xf32>
      %42 = arith.addf %41, %40 : vector<2x4xf32>
      %43 = arith.divf %41, %42 : vector<2x4xf32>
      %c0_33 = arith.constant 0 : index
      %c0_34 = arith.constant 0 : index
      %44 = vector.load %arg7[%c0_33, %c0_34] : memref<2x4xf32, #tpu.memory_space<vmem>>, vector<2x4xf32>
      tpu.vector_store %arg7[%c0_33, %c0_34], %43 {strides = array<i32>} : memref<2x4xf32, #tpu.memory_space<vmem>>, vector<2x4xf32>,
    } else {
    }
    return
  }
  func.func @transform_0(%arg0: i32, %arg1: i32) -> (i32, i32, i32) {
    %c0_i32 = arith.constant 0 : i32
    %c0_i32_0 = arith.constant 0 : i32
    return %arg0, %c0_i32, %arg1 : i32, i32, i32
  }
  func.func @transform_1(%arg0: i32, %arg1: i32) -> (i32, i32) {
    %c0_i32 = arith.constant 0 : i32
    %c0_i32_0 = arith.constant 0 : i32
    %c0_i32_1 = arith.constant 0 : i32
    return %c0_i32, %c0_i32_0 : i32, i32
  }
  func.func @transform_2(%arg0: i32, %arg1: i32) -> (i32, i32) {
    %c0_i32 = arith.constant 0 : i32
    %c0_i32_0 = arith.constant 0 : i32
    %c0_i32_1 = arith.constant 0 : i32
    return %c0_i32, %c0_i32_0 : i32, i32
  }
  func.func @transform_3(%arg0: i32, %arg1: i32) -> (i32, i32) {
    %c0_i32 = arith.constant 0 : i32
    %c0_i32_0 = arith.constant 0 : i32
    %c0_i32_1 = arith.constant 0 : i32
    return %c0_i32, %c0_i32_0 : i32, i32
  }
  func.func @transform_4(%arg0: i32, %arg1: i32) -> (i32, i32) {
    %c0_i32 = arith.constant 0 : i32
    %c0_i32_0 = arith.constant 0 : i32
    %c0_i32_1 = arith.constant 0 : i32
    return %c0_i32, %c0_i32_0 : i32, i32
  }
  func.func @transform_5(%arg0: i32, %arg1: i32) -> (i32, i32) {
    %c0_i32 = arith.constant 0 : i32
    %c0_i32_0 = arith.constant 0 : i32
    return %arg0, %c0_i32 : i32, i32
  }
}

</mosaic_0001>

<llo_original>
// kernel: tpu_custom_call.1
$region0: #{tpu_custom_call.1}
  #allocation0 [shape = 'u32[]', space=smem, size = 0x4, offset = 0x4, fixed_abs, tag = 'smem constant byte address 0x4 - core index']
  #allocation1 [shape = 'u32[144,128]{1,0:T(1,128)}', space=vmem, size = 0x12000, scoped, tag = 'internal scratch']
  #allocation2 [shape = 'f32[2,4]{1,0:T(2,128)}', space=vmem, size = 0x400, scoped, tag = 'scratch operand']
  #allocation3 [shape = 'f32[2,4]{1,0:T(2,128)}', space=vmem, size = 0x400, scoped, tag = 'scratch operand']
  %s0 = inlined_call_operand.hbm [shape: f32[2,4,256], index: 0, kind: input, shape index: {}]
  %s1 = inlined_call_operand.vmem [shape: f32[4,2], index: 1, kind: input, shape index: {}]
  %s2 = inlined_call_operand.vmem [shape: f32[1,2], index: 2, kind: input, shape index: {}]
  %s3 = inlined_call_operand.vmem [shape: f32[2,4], index: 3, kind: input, shape index: {}]
  %s4 = inlined_call_operand.vmem [shape: f32[1,4], index: 4, kind: input, shape index: {}]
  %s5 = inlined_call_operand.hbm [shape: f32[2,4], index: 5, kind: output, shape index: {}]
  %s6 = sld [smem:[#allocation0]]
  $region65: #{tpu_custom_call.1} parent=0
    _
  %s8 = ssub.s32 1, %s6
  %s9 = scalar_select 0, %s8, %s6
  $region1: #{tpu_custom_call.1} parent=0
    #allocation4 [shape = 'u8[8192]{0}', space=vmem, size = 0x2000, scoped, tag = 'input window, operand 0']
    #allocation5 [shape = 's32[2]{0}', space=sflag, size = 0x8, scoped, tag = 'scoped memory for tpu_custom_call.1']
    #allocation6 [shape = 's32[2]{0}', space=sflag, size = 0x8, scoped, tag = 'scoped memory for tpu_custom_call.1']
    #allocation7 [shape = 'u8[1024]{0}', space=vmem, size = 0x400, scoped, tag = 'output window, operand 0, single buffered']
    %10 = vsyncpa [#allocation5], 0
    %s11 = scalar_lea.sflag [#allocation5], 1
    %12 = vsyncpa %s11, 0
    %13 = vsyncpa [#allocation6], 0
    loop: start=0, step=1, limit=4
    $region2: #{tpu_custom_call.1} parent=1 // loop_pre_header
      _
    $region3: #{tpu_custom_call.1} parent=1 // loop_header
      %s15 = sphi 0, %s19
      %p16 = scmp.ge.s32.totalorder %s15, 4
      %s22 = sphi 0, %s34
      %s23 = sphi 0, %s30
      %s24 = sphi 0, %s22
      %s25 = sphi 0, %s23
      %s26 = sphi 0, %s24
      %s27 = sphi 0, %s25
      %s39 = sphi 0, %s41
      %s42 = sphi 0, %s39
      %s43 = sphi 0, %s42
      %s59 = sphi 0, %s43
      %s63 = sphi 0, %s63
      %s65 = sphi 0, %s63
      %s66 = sphi 0, %s65
      %s80 = sphi 0, %s66
      %s84 = sphi 0, %s84
      %s86 = sphi 0, %s84
      %s87 = sphi 0, %s86
      %s101 = sphi 0, %s87
      %s105 = sphi 0, %s105
      %s107 = sphi 0, %s105
      %s108 = sphi 0, %s107
      %s122 = sphi 0, %s108
      %s126 = sphi 0, %s126
      %s128 = sphi 0, %s126
      %s129 = sphi 0, %s128
      %s143 = sphi 0, %s129
      %s149 = sphi 0, %s151
      %s152 = sphi 0, %s149
      %s153 = sphi 0, %s152
      %s169 = sphi 0, %s153
    $region4: #{tpu_custom_call.1} parent=1 // loop_header_branch
      %18 = sbr.rel (%p16) target = $region8
    $region5: #{tpu_custom_call.1} parent=1 // loop_body
      %s20 = ssub.s32 %s15, 1
      %s21 = ssub.s32 %s15, 2
      %s28 = sadd.s32 1, %s23
      %p29 = scmp.ge.s32.totalorder %s28, 2
      %s30 = scalar_select %p29, 0, %s28
      %s31 = sadd.s32 1, %s22
      %s32 = scalar_select %p29, %s31, %s22
      %p33 = scmp.ge.s32.totalorder %s32, 1
      %s34 = scalar_select %p33, 0, %s32
      %s35 = ssub.s32 %s22, %s34
      %s36 = ssub.s32 %s23, %s30
      %s37 = sor.u32 %s35, %s36
      %p38 = scmp.eq.s32.totalorder %s37, 0
      %s40 = sadd.s32 %s39, 1
      %s41 = scalar_select %p38, %s39, %s40
      %p44 = pneg %p38
      %p45 = scmp.eq.s32.totalorder %s15, 1
      %p46 = por %p44, %p45
      %p47 = scmp.ne.s32.totalorder %s39, %s42
      %p48 = scmp.eq.s32.totalorder %s15, 0
      %p49 = por %p47, %p48
      %p50 = scmp.ne.s32.totalorder %s39, %s42
      %p51 = scmp.eq.s32.totalorder %s20, 1
      %p52 = por %p50, %p51
      %p53 = scmp.ne.s32.totalorder %s42, %s43
      %p54 = scmp.eq.s32.totalorder %s20, 0
      %p55 = por %p53, %p54
      %p56 = scmp.ne.s32.totalorder %s42, %s43
      %p57 = scmp.eq.s32.totalorder %s21, 1
      %p58 = por %p56, %p57
      %p60 = scmp.ne.s32.totalorder %s43, %s59
      %p61 = scmp.eq.s32.totalorder %s21, 0
      %p62 = por %p60, %p61
      %s64 = sadd.s32 %s63, 1
      %p67 = scmp.eq.s32.totalorder %s15, 1
      %p68 = scmp.ne.s32.totalorder %s63, %s65
      %p69 = scmp.eq.s32.totalorder %s15, 0
      %p70 = por %p68, %p69
      %p71 = scmp.ne.s32.totalorder %s63, %s65
      %p72 = scmp.eq.s32.totalorder %s20, 1
      %p73 = por %p71, %p72
      %p74 = scmp.ne.s32.totalorder %s65, %s66
      %p75 = scmp.eq.s32.totalorder %s20, 0
      %p76 = por %p74, %p75
      %p77 = scmp.ne.s32.totalorder %s65, %s66
      %p78 = scmp.eq.s32.totalorder %s21, 1
      %p79 = por %p77, %p78
      %p81 = scmp.ne.s32.totalorder %s66, %s80
      %p82 = scmp.eq.s32.totalorder %s21, 0
      %p83 = por %p81, %p82
      %s85 = sadd.s32 %s84, 1
      %p88 = scmp.eq.s32.totalorder %s15, 1
      %p89 = scmp.ne.s32.totalorder %s84, %s86
      %p90 = scmp.eq.s32.totalorder %s15, 0
      %p91 = por %p89, %p90
      %p92 = scmp.ne.s32.totalorder %s84, %s86
      %p93 = scmp.eq.s32.totalorder %s20, 1
      %p94 = por %p92, %p93
      %p95 = scmp.ne.s32.totalorder %s86, %s87
      %p96 = scmp.eq.s32.totalorder %s20, 0
      %p97 = por %p95, %p96
      %p98 = scmp.ne.s32.totalorder %s86, %s87
      %p99 = scmp.eq.s32.totalorder %s21, 1
      %p100 = por %p98, %p99
      %p102 = scmp.ne.s32.totalorder %s87, %s101
      %p103 = scmp.eq.s32.totalorder %s21, 0
      %p104 = por %p102, %p103
      %s106 = sadd.s32 %s105, 1
      %p109 = scmp.eq.s32.totalorder %s15, 1
      %p110 = scmp.ne.s32.totalorder %s105, %s107
      %p111 = scmp.eq.s32.totalorder %s15, 0
      %p112 = por %p110, %p111
      %p113 = scmp.ne.s32.totalorder %s105, %s107
      %p114 = scmp.eq.s32.totalorder %s20, 1
      %p115 = por %p113, %p114
      %p116 = scmp.ne.s32.totalorder %s107, %s108
      %p117 = scmp.eq.s32.totalorder %s20, 0
      %p118 = por %p116, %p117
      %p119 = scmp.ne.s32.totalorder %s107, %s108
      %p120 = scmp.eq.s32.totalorder %s21, 1
      %p121 = por %p119, %p120
      %p123 = scmp.ne.s32.totalorder %s108, %s122
      %p124 = scmp.eq.s32.totalorder %s21, 0
      %p125 = por %p123, %p124
      %s127 = sadd.s32 %s126, 1
      %p130 = scmp.eq.s32.totalorder %s15, 1
      %p131 = scmp.ne.s32.totalorder %s126, %s128
      %p132 = scmp.eq.s32.totalorder %s15, 0
      %p133 = por %p131, %p132
      %p134 = scmp.ne.s32.totalorder %s126, %s128
      %p135 = scmp.eq.s32.totalorder %s20, 1
      %p136 = por %p134, %p135
      %p137 = scmp.ne.s32.totalorder %s128, %s129
      %p138 = scmp.eq.s32.totalorder %s20, 0
      %p139 = por %p137, %p138
      %p140 = scmp.ne.s32.totalorder %s128, %s129
      %p141 = scmp.eq.s32.totalorder %s21, 1
      %p142 = por %p140, %p141
      %p144 = scmp.ne.s32.totalorder %s129, %s143
      %p145 = scmp.eq.s32.totalorder %s21, 0
      %p146 = por %p144, %p145
      %s147 = ssub.s32 %s22, %s34
      %p148 = scmp.eq.s32.totalorder %s147, 0
      %s150 = sadd.s32 %s149, 1
      %s151 = scalar_select %p148, %s149, %s150
      %p154 = pneg %p148
      %p155 = scmp.eq.s32.totalorder %s15, 1
      %p156 = por %p154, %p155
      %p157 = scmp.ne.s32.totalorder %s149, %s152
      %p158 = scmp.eq.s32.totalorder %s15, 0
      %p159 = por %p157, %p158
      %p160 = scmp.ne.s32.totalorder %s149, %s152
      %p161 = scmp.eq.s32.totalorder %s20, 1
      %p162 = por %p160, %p161
      %p163 = scmp.ne.s32.totalorder %s152, %s153
      %p164 = scmp.eq.s32.totalorder %s20, 0
      %p165 = por %p163, %p164
      %p166 = scmp.ne.s32.totalorder %s152, %s153
      %p167 = scmp.eq.s32.totalorder %s21, 1
      %p168 = por %p166, %p167
      %p170 = scmp.ne.s32.totalorder %s153, %s169
      %p171 = scmp.eq.s32.totalorder %s21, 0
      %p172 = por %p170, %p171
      %p173 = scmp.le.s32.totalorder 1, %s15
      %p174 = scmp.lt.s32.totalorder %s15, 3
      %p175 = pnand %p173, %p174
      %p176 = pneg %p175
      // Predicated region
      $region9: #{tpu_custom_call.1} parent=5 // pred_check
        _
      $region10: #{tpu_custom_call.1} parent=5 // pred_check_branch
        %178 = sbr.rel (%p175) target = $region12
      $region11: #{tpu_custom_call.1} parent=5 // pred_region
        %s179 = ssub.s32 %s15, 1
        // Predicated region
        $region13: #{tpu_custom_call.1} parent=11 // pred_check
          %p180 = pneg %p76
        $region14: #{tpu_custom_call.1} parent=11 // pred_check_branch
          %182 = sbr.rel (%p180) target = $region16
        $region15: #{tpu_custom_call.1} parent=11 // pred_region
          _
        $region16: #{tpu_custom_call.1} parent=11 // pred_fallthru
          _
        // Predicated region
        $region17: #{tpu_custom_call.1} parent=11 // pred_check
          %p183 = pneg %p97
        $region18: #{tpu_custom_call.1} parent=11 // pred_check_branch
          %185 = sbr.rel (%p183) target = $region20
        $region19: #{tpu_custom_call.1} parent=11 // pred_region
          _
        $region20: #{tpu_custom_call.1} parent=11 // pred_fallthru
          _
        // Predicated region
        $region21: #{tpu_custom_call.1} parent=11 // pred_check
          %p186 = pneg %p118
        $region22: #{tpu_custom_call.1} parent=11 // pred_check_branch
          %188 = sbr.rel (%p186) target = $region24
        $region23: #{tpu_custom_call.1} parent=11 // pred_region
          _
        $region24: #{tpu_custom_call.1} parent=11 // pred_fallthru
          _
        // Predicated region
        $region25: #{tpu_custom_call.1} parent=11 // pred_check
          %p189 = pneg %p139
        $region26: #{tpu_custom_call.1} parent=11 // pred_check_branch
          %191 = sbr.rel (%p189) target = $region28
        $region27: #{tpu_custom_call.1} parent=11 // pred_region
          _
        $region28: #{tpu_custom_call.1} parent=11 // pred_fallthru
          _
      $region12: #{tpu_custom_call.1} parent=5 // pred_fallthru
        _
      %p192 = scmp.lt.s32.totalorder %s15, 2
      // Predicated region
      $region29: #{tpu_custom_call.1} parent=5 // pred_check
        %p193 = pneg %p192
      $region30: #{tpu_custom_call.1} parent=5 // pred_check_branch
        %195 = sbr.rel (%p193) target = $region32
      $region31: #{tpu_custom_call.1} parent=5 // pred_region
        // Predicated region
        $region33: #{tpu_custom_call.1} parent=31 // pred_check
          %p196 = pneg %p49
        $region34: #{tpu_custom_call.1} parent=31 // pred_check_branch
          %198 = sbr.rel (%p196) target = $region36
        $region35: #{tpu_custom_call.1} parent=31 // pred_region
          %s199 = sand.u32 %s39, 1
          %s200 = scalar_lea.sflag [#allocation5], %s199
          %s201 = sand.u32 %s39, 1
          %s202 = smul.addr %s201, 8
          %s203 = scalar_lea.vmem [#allocation4], %s202
          %s204 = smul.u32 2, %s22
          %s206 = ssub.s32 128, 128
          %207 = vsyncadd %s200, %s206
          %s208 = smul.addr %s204, 2
          %s209 = sadd.s32 %s23, %s208
          %s210 = smul.addr %s209, 64
          %s211 = scalar_lea.hbm %s0, %s210
          %s212 = sshll.u32 %s203, 4
          %s213 = int_to_ptr.vmem [resolvable:$true] %s212
          %218 = dma.hbm_to_vmem [thread:$0]  %s211, 128, %s213, %s200, 128, 64, 4
        $region36: #{tpu_custom_call.1} parent=31 // pred_fallthru
          _
      $region32: #{tpu_custom_call.1} parent=5 // pred_fallthru
        _
      %p219 = scmp.le.s32.totalorder 1, %s15
      %p220 = scmp.lt.s32.totalorder %s15, 3
      %p221 = pnand %p219, %p220
      %p222 = pneg %p221
      // Predicated region
      $region37: #{tpu_custom_call.1} parent=5 // pred_check
        _
      $region38: #{tpu_custom_call.1} parent=5 // pred_check_branch
        %224 = sbr.rel (%p221) target = $region40
      $region39: #{tpu_custom_call.1} parent=5 // pred_region
        %s225 = ssub.s32 %s15, 1
        %s226 = sand.u32 %s42, 1
        %s227 = scalar_lea.sflag [#allocation5], %s226
        %s228 = sand.u32 %s42, 1
        %s229 = smul.addr %s228, 8
        %s230 = scalar_lea.vmem [#allocation4], %s229
        // Predicated region
        $region41: #{tpu_custom_call.1} parent=39 // pred_check
          %p231 = pneg %p55
        $region42: #{tpu_custom_call.1} parent=39 // pred_check_branch
          %233 = sbr.rel (%p231) target = $region44
        $region43: #{tpu_custom_call.1} parent=39 // pred_region
          %234 = dma.done %s227, 128
        $region44: #{tpu_custom_call.1} parent=39 // pred_fallthru
          _
        %s235 = sand.u32 %s42, 1
        %s236 = scalar_lea.sflag [#allocation5], %s235
        %s237 = sand.u32 %s42, 1
        %s238 = smul.addr %s237, 8
        %s239 = scalar_lea.vmem [#allocation4], %s238
        %p240 = pneg %p55
        %p241 = pneg %p52
        %p242 = pneg %p76
        %p243 = pneg %p73
        %p244 = pneg %p97
        %p245 = pneg %p94
        %p246 = pneg %p118
        %p247 = pneg %p115
        %p248 = pneg %p139
        %p249 = pneg %p136
        %p250 = pneg %p165
        %p251 = pneg %p162
        %s252 = smul.u32 2, %s24
        %p253 = scmp.eq.s32.totalorder %s25, 0
        // Predicated region
        $region45: #{tpu_custom_call.1} parent=39 // pred_check
          %p254 = pneg %p253
        $region46: #{tpu_custom_call.1} parent=39 // pred_check_branch
          %256 = sbr.rel (%p254) target = $region48
        $region47: #{tpu_custom_call.1} parent=39 // pred_region
          %vm257 = vcmask 25600
          %258 = vst.msk [vmem:[#allocation2] sm:$0x3] %vm257, 0.0
          %259 = vst.msk [vmem:[#allocation3] sm:$0x3] %vm257, -inf
        $region48: #{tpu_custom_call.1} parent=39 // pred_fallthru
          _
        %v260 = vld [vmem:[%s230] sm:$0xf]
        %v261 = vld [vmem:[%s230 + $0x4] sm:$0xf]
        %v262 = vld [vmem:[#allocation2] sm:$0x3]
        %vm263 = vcmask 1043456
        %v264 = vsel %vm263, %v260, 0.0
        %265 = vadd.xlane.f32.xlu0 %v264
        %v266 = vpop.xlane.xlu0 %265
        %v267 = vsel %vm263, %v261, 0.0
        %268 = vadd.xlane.f32.xlu0 %v267
        %v269 = vpop.xlane.xlu0 %268
        %v272 = vlaneseq
        %v273 = vand.u32 %v272, 127
        %v274 = vlaneseq
        %v275 = vshrl.u32 %v274, 7
        %v276 = vsub.s32 %v273, %v275
        %v277 = vrot.slane %v266, %v276
        %v278 = vlaneseq
        %v279 = vshrl.u32 %v278, 7
        %v280 = vsub.s32 %v273, %v279
        %v281 = vrot.slane %v269, %v280
        %vm282 = vcmask 1041409
        %v283 = vsel %vm282, %v281, %v277
        %v285 = vadd.f32 %v262, %v283
        %vm286 = vcmask 25600
        %287 = vst.msk [vmem:[#allocation2] sm:$0x3] %vm286, %v285
        %v288 = vld [vmem:[#allocation3] sm:$0x3]
        %v289 = vsel %vm263, %v260, -inf
        %290 = vmax.xlane.f32.xlu0 %v289
        %v291 = vpop.xlane.xlu0 %290
        %v292 = vsel %vm263, %v261, -inf
        %293 = vmax.xlane.f32.xlu0 %v292
        %v294 = vpop.xlane.xlu0 %293
        %v297 = vlaneseq
        %v298 = vshrl.u32 %v297, 7
        %v299 = vsub.s32 %v273, %v298
        %v300 = vrot.slane %v291, %v299
        %v301 = vlaneseq
        %v302 = vshrl.u32 %v301, 7
        %v303 = vsub.s32 %v273, %v302
        %v304 = vrot.slane %v294, %v303
        %v305 = vsel %vm282, %v304, %v300
        %v307 = vmax.f32 %v288, %v305
        %308 = vst.msk [vmem:[#allocation3] sm:$0x3] %vm286, %v307
        %p309 = scmp.eq.s32.totalorder %s25, 1
        // Predicated region
        $region49: #{tpu_custom_call.1} parent=39 // pred_check
          %p310 = pneg %p309
        $region50: #{tpu_custom_call.1} parent=39 // pred_check_branch
          %312 = sbr.rel (%p310) target = $region52
        $region51: #{tpu_custom_call.1} parent=39 // pred_region
          %v313 = vld [vmem:[#allocation2] sm:$0x3]
          %v314 = vmul.f32 %v313, 0.00390625
          %v315 = vld [vmem:[#allocation3] sm:$0x3]
          %v316 = vld [vmem:[%s1] sm:$0xf]
          %v317 = vld [vmem:[%s2] sm:$0x1]
          %v318 = vld [vmem:[%s3] sm:$0x3]
          %v319 = vld [vmem:[%s4] sm:$0x1]
          %v321 = vlaneseq
          %v322 = vshrl.u32 %v321, 7
          %v323 = vsub.s32 0, %v322
          %v324 = vrot.slane %v317, %v323
          %vm326 = vcmask 31744
          %v328 = vsel %vm326, %v314, 0
          %v331 = vsel %vm263, %v316, 0
          %333 = vmatprep.subr.mxu0 0.0
          %334 = vmatpush1.msra.mxu0 0.0
          %335 = vmatprep.subr.mxu0 0.0
          %336 = vmatpush1.msra.mxu0 0.0
          %337 = vmatprep.subr.mxu0 0.0
          %338 = vmatpush1.msra.mxu0 0.0
          %339 = vmatprep.subr.mxu0 0.0
          %340 = vmatpush1.msra.mxu0 0.0
          %341 = vmatprep.subr.mxu0 0.0
          %342 = vmatpush1.msra.mxu0 0.0
          %343 = vmatprep.subr.mxu0 0.0
          %344 = vmatpush1.msra.mxu0 0.0
          %345 = vmatprep.subr.mxu0 0.0
          %346 = vmatpush1.msra.mxu0 0.0
          %347 = vmatprep.subr.mxu0 0.0
          %348 = vmatpush1.msra.mxu0 0.0
          %349 = vmatprep.subr.mxu0 0.0
          %350 = vmatpush1.msra.mxu0 0.0
          %351 = vmatprep.subr.mxu0 0.0
          %352 = vmatpush1.msra.mxu0 0.0
          %353 = vmatprep.subr.mxu0 0.0
          %354 = vmatpush1.msra.mxu0 0.0
          %355 = vmatprep.subr.mxu0 0.0
          %356 = vmatpush1.msra.mxu0 0.0
          %357 = vmatprep.subr.mxu0 0.0
          %358 = vmatpush1.msra.mxu0 0.0
          %359 = vmatprep.subr.mxu0 0.0
          %360 = vmatpush1.msra.mxu0 0.0
          %361 = vmatprep.subr.mxu0 0.0
          %362 = vmatpush1.msra.mxu0 0.0
          %363 = vmatprep.subr.mxu0 0.0
          %364 = vmatpush1.msra.mxu0 %v331
          %365 = vmatprep.subr.mxu0 0.0
          %366 = vmatpush2.msra.mxu0 0.0
          %367 = vmatprep.subr.mxu0 0.0
          %368 = vmatpush2.msra.mxu0 0.0
          %369 = vmatprep.subr.mxu0 0.0
          %370 = vmatpush2.msra.mxu0 0.0
          %371 = vmatprep.subr.mxu0 0.0
          %372 = vmatpush2.msra.mxu0 0.0
          %373 = vmatprep.subr.mxu0 0.0
          %374 = vmatpush2.msra.mxu0 0.0
          %375 = vmatprep.subr.mxu0 0.0
          %376 = vmatpush2.msra.mxu0 0.0
          %377 = vmatprep.subr.mxu0 0.0
          %378 = vmatpush2.msra.mxu0 0.0
          %379 = vmatprep.subr.mxu0 0.0
          %380 = vmatpush2.msra.mxu0 0.0
          %381 = vmatprep.subr.mxu0 0.0
          %382 = vmatpush2.msra.mxu0 0.0
          %383 = vmatprep.subr.mxu0 0.0
          %384 = vmatpush2.msra.mxu0 0.0
          %385 = vmatprep.subr.mxu0 0.0
          %386 = vmatpush2.msra.mxu0 0.0
          %387 = vmatprep.subr.mxu0 0.0
          %388 = vmatpush2.msra.mxu0 0.0
          %389 = vmatprep.subr.mxu0 0.0
          %390 = vmatpush2.msra.mxu0 0.0
          %391 = vmatprep.subr.mxu0 0.0
          %392 = vmatpush2.msra.mxu0 0.0
          %393 = vmatprep.subr.mxu0 0.0
          %394 = vmatpush2.msra.mxu0 0.0
          %395 = vmatprep.subr.mxu0 0.0
          %396 = vmatpush2.msra.mxu0 0.0
          %397 = vmatprep.mubr.f32.mxu0 0.0
          %398 = vmatmul.mubr.f32.gmra.mxu0 %v328
          %v399 = vpop.f32.mrf.mxu0
          %v400 = vadd.f32 %v324, %v399
          %v401 = vpop.f32.mrf.mxu0
          %402 = vdwg.mxu0
          %v403 = vmax.f32 %v400, 0.0
          %v405 = vsel %vm326, %v315, 0
          %407 = vmatprep.subr.mxu0 0.0
          %408 = vmatpush1.msra.mxu0 0.0
          %409 = vmatprep.subr.mxu0 0.0
          %410 = vmatpush1.msra.mxu0 0.0
          %411 = vmatprep.subr.mxu0 0.0
          %412 = vmatpush1.msra.mxu0 0.0
          %413 = vmatprep.subr.mxu0 0.0
          %414 = vmatpush1.msra.mxu0 0.0
          %415 = vmatprep.subr.mxu0 0.0
          %416 = vmatpush1.msra.mxu0 0.0
          %417 = vmatprep.subr.mxu0 0.0
          %418 = vmatpush1.msra.mxu0 0.0
          %419 = vmatprep.subr.mxu0 0.0
          %420 = vmatpush1.msra.mxu0 0.0
          %421 = vmatprep.subr.mxu0 0.0
          %422 = vmatpush1.msra.mxu0 0.0
          %423 = vmatprep.subr.mxu0 0.0
          %424 = vmatpush1.msra.mxu0 0.0
          %425 = vmatprep.subr.mxu0 0.0
          %426 = vmatpush1.msra.mxu0 0.0
          %427 = vmatprep.subr.mxu0 0.0
          %428 = vmatpush1.msra.mxu0 0.0
          %429 = vmatprep.subr.mxu0 0.0
          %430 = vmatpush1.msra.mxu0 0.0
          %431 = vmatprep.subr.mxu0 0.0
          %432 = vmatpush1.msra.mxu0 0.0
          %433 = vmatprep.subr.mxu0 0.0
          %434 = vmatpush1.msra.mxu0 0.0
          %435 = vmatprep.subr.mxu0 0.0
          %436 = vmatpush1.msra.mxu0 0.0
          %437 = vmatprep.subr.mxu0 0.0
          %438 = vmatpush1.msra.mxu0 %v331
          %439 = vmatprep.subr.mxu0 0.0
          %440 = vmatpush2.msra.mxu0 0.0
          %441 = vmatprep.subr.mxu0 0.0
          %442 = vmatpush2.msra.mxu0 0.0
          %443 = vmatprep.subr.mxu0 0.0
          %444 = vmatpush2.msra.mxu0 0.0
          %445 = vmatprep.subr.mxu0 0.0
          %446 = vmatpush2.msra.mxu0 0.0
          %447 = vmatprep.subr.mxu0 0.0
          %448 = vmatpush2.msra.mxu0 0.0
          %449 = vmatprep.subr.mxu0 0.0
          %450 = vmatpush2.msra.mxu0 0.0
          %451 = vmatprep.subr.mxu0 0.0
          %452 = vmatpush2.msra.mxu0 0.0
          %453 = vmatprep.subr.mxu0 0.0
          %454 = vmatpush2.msra.mxu0 0.0
          %455 = vmatprep.subr.mxu0 0.0
          %456 = vmatpush2.msra.mxu0 0.0
          %457 = vmatprep.subr.mxu0 0.0
          %458 = vmatpush2.msra.mxu0 0.0
          %459 = vmatprep.subr.mxu0 0.0
          %460 = vmatpush2.msra.mxu0 0.0
          %461 = vmatprep.subr.mxu0 0.0
          %462 = vmatpush2.msra.mxu0 0.0
          %463 = vmatprep.subr.mxu0 0.0
          %464 = vmatpush2.msra.mxu0 0.0
          %465 = vmatprep.subr.mxu0 0.0
          %466 = vmatpush2.msra.mxu0 0.0
          %467 = vmatprep.subr.mxu0 0.0
          %468 = vmatpush2.msra.mxu0 0.0
          %469 = vmatprep.subr.mxu0 0.0
          %470 = vmatpush2.msra.mxu0 0.0
          %471 = vmatprep.mubr.f32.mxu0 0.0
          %472 = vmatmul.mubr.f32.gmra.mxu0 %v405
          %v473 = vpop.f32.mrf.mxu0
          %v474 = vadd.f32 %v324, %v473
          %v475 = vpop.f32.mrf.mxu0
          %476 = vdwg.mxu0
          %v477 = vmax.f32 %v474, 0.0
          %v478 = vadd.f32 %v403, %v477
          %v479 = vmul.f32 %v319, 2.0
          %v481 = vlaneseq
          %v482 = vshrl.u32 %v481, 7
          %v483 = vsub.s32 0, %v482
          %v484 = vrot.slane %v479, %v483
          %vm486 = vcmask 15360
          %v488 = vsel %vm486, %v478, 0
          %vm490 = vcmask 1041408
          %v492 = vsel %vm490, %v318, 0
          %494 = vmatprep.subr.mxu0 0.0
          %495 = vmatpush1.msra.mxu0 0.0
          %496 = vmatprep.subr.mxu0 0.0
          %497 = vmatpush1.msra.mxu0 0.0
          %498 = vmatprep.subr.mxu0 0.0
          %499 = vmatpush1.msra.mxu0 0.0
          %500 = vmatprep.subr.mxu0 0.0
          %501 = vmatpush1.msra.mxu0 0.0
          %502 = vmatprep.subr.mxu0 0.0
          %503 = vmatpush1.msra.mxu0 0.0
          %504 = vmatprep.subr.mxu0 0.0
          %505 = vmatpush1.msra.mxu0 0.0
          %506 = vmatprep.subr.mxu0 0.0
          %507 = vmatpush1.msra.mxu0 0.0
          %508 = vmatprep.subr.mxu0 0.0
          %509 = vmatpush1.msra.mxu0 0.0
          %510 = vmatprep.subr.mxu0 0.0
          %511 = vmatpush1.msra.mxu0 0.0
          %512 = vmatprep.subr.mxu0 0.0
          %513 = vmatpush1.msra.mxu0 0.0
          %514 = vmatprep.subr.mxu0 0.0
          %515 = vmatpush1.msra.mxu0 0.0
          %516 = vmatprep.subr.mxu0 0.0
          %517 = vmatpush1.msra.mxu0 0.0
          %518 = vmatprep.subr.mxu0 0.0
          %519 = vmatpush1.msra.mxu0 0.0
          %520 = vmatprep.subr.mxu0 0.0
          %521 = vmatpush1.msra.mxu0 0.0
          %522 = vmatprep.subr.mxu0 0.0
          %523 = vmatpush1.msra.mxu0 0.0
          %524 = vmatprep.subr.mxu0 0.0
          %525 = vmatpush1.msra.mxu0 %v492
          %526 = vmatprep.subr.mxu0 0.0
          %527 = vmatpush2.msra.mxu0 0.0
          %528 = vmatprep.subr.mxu0 0.0
          %529 = vmatpush2.msra.mxu0 0.0
          %530 = vmatprep.subr.mxu0 0.0
          %531 = vmatpush2.msra.mxu0 0.0
          %532 = vmatprep.subr.mxu0 0.0
          %533 = vmatpush2.msra.mxu0 0.0
          %534 = vmatprep.subr.mxu0 0.0
          %535 = vmatpush2.msra.mxu0 0.0
          %536 = vmatprep.subr.mxu0 0.0
          %537 = vmatpush2.msra.mxu0 0.0
          %538 = vmatprep.subr.mxu0 0.0
          %539 = vmatpush2.msra.mxu0 0.0
          %540 = vmatprep.subr.mxu0 0.0
          %541 = vmatpush2.msra.mxu0 0.0
          %542 = vmatprep.subr.mxu0 0.0
          %543 = vmatpush2.msra.mxu0 0.0
          %544 = vmatprep.subr.mxu0 0.0
          %545 = vmatpush2.msra.mxu0 0.0
          %546 = vmatprep.subr.mxu0 0.0
          %547 = vmatpush2.msra.mxu0 0.0
          %548 = vmatprep.subr.mxu0 0.0
          %549 = vmatpush2.msra.mxu0 0.0
          %550 = vmatprep.subr.mxu0 0.0
          %551 = vmatpush2.msra.mxu0 0.0
          %552 = vmatprep.subr.mxu0 0.0
          %553 = vmatpush2.msra.mxu0 0.0
          %554 = vmatprep.subr.mxu0 0.0
          %555 = vmatpush2.msra.mxu0 0.0
          %556 = vmatprep.subr.mxu0 0.0
          %557 = vmatpush2.msra.mxu0 0.0
          %558 = vmatprep.mubr.f32.mxu0 0.0
          %559 = vmatmul.mubr.f32.gmra.mxu0 %v488
          %v560 = vpop.f32.mrf.mxu0
          %v561 = vadd.f32 %v484, %v560
          %v562 = vpop.f32.mrf.mxu0
          %563 = vdwg.mxu0
          %v564 = vxor.u32 %v561, 2147483648
          %v565 = vmul.f32 %v564, 1.442695
          %v566 = vpow.pop %v565
          %v567 = vadd.f32 %v566, 1.0
          %v568 = vrcp.pop %v567
          %v569 = vmul.f32 1.0, %v568
          %570 = vst.msk [vmem:[#allocation7] sm:$0x3] %vm286, %v569
        $region52: #{tpu_custom_call.1} parent=39 // pred_fallthru
          _
        // Predicated region
        $region53: #{tpu_custom_call.1} parent=39 // pred_check
          %p571 = pneg %p162
        $region54: #{tpu_custom_call.1} parent=39 // pred_check_branch
          %573 = sbr.rel (%p571) target = $region56
        $region55: #{tpu_custom_call.1} parent=39 // pred_region
          %s575 = ssub.s32 32, 32
          %576 = vsyncadd [#allocation6], %s575
          %s577 = smul.addr %s24, 32
          %s578 = scalar_lea.hbm %s5, %s577
          %s580 = sshll.u32 [#allocation7], 4
          %s581 = int_to_ptr.vmem [resolvable:$true] %s580
          %583 = dma.vmem_to_hbm [thread:$0]  %s581, 32, %s578, [#allocation6]
        $region56: #{tpu_custom_call.1} parent=39 // pred_fallthru
          _
        // Predicated region
        $region57: #{tpu_custom_call.1} parent=39 // pred_check
          %p584 = pneg %p162
        $region58: #{tpu_custom_call.1} parent=39 // pred_check_branch
          %586 = sbr.rel (%p584) target = $region60
        $region59: #{tpu_custom_call.1} parent=39 // pred_region
          %587 = dma.done [#allocation6], 32
        $region60: #{tpu_custom_call.1} parent=39 // pred_fallthru
          _
      $region40: #{tpu_custom_call.1} parent=5 // pred_fallthru
        _
      %p588 = scmp.le.s32.totalorder 2, %s15
      // Predicated region
      $region61: #{tpu_custom_call.1} parent=5 // pred_check
        %p589 = pneg %p588
      $region62: #{tpu_custom_call.1} parent=5 // pred_check_branch
        %591 = sbr.rel (%p589) target = $region64
      $region63: #{tpu_custom_call.1} parent=5 // pred_region
        %s592 = ssub.s32 %s15, 2
      $region64: #{tpu_custom_call.1} parent=5 // pred_fallthru
        _
    $region6: #{tpu_custom_call.1} parent=1 // loop_footer
      %s19 = sadd.s32 1, %s15
    $region7: #{tpu_custom_call.1} parent=1 // loop_footer_branch
      %14 = sbr.rel target = $region3
    $region8: #{tpu_custom_call.1} parent=1 // loop_exit
      _
    %593 = vsyncpa [#allocation5], 1
    %s594 = scalar_lea.sflag [#allocation5], 1
    %595 = vsyncpa %s594, 1
    %596 = vsyncpa [#allocation6], 1
    %s597 = scalar_lea.sflag [#allocation6], 1
    %598 = vsyncpa %s597, 1

</llo_original>
